<compile_context>
chip_gen: v7x
topology: tpu7x:2x2x1
jax: 0.10.0
libtpu: 0.0.40
codegen_flags: <defaults>
</compile_context>

<pallas_src>
import functools

import jax
import jax.numpy as jnp
from jax import lax
from jax.experimental import pallas as pl
from jax.experimental.pallas import tpu as pltpu

C = 128           # channel count fixed by the module
NEG_SLOPE = 0.05
DROP_P = 0.4      # TODO(synk): training-mode dropout (prng mask + 1/(1-p) scale)
                  # is not implemented; eval-mode (identity) semantics are used.


def _leaky(x):
    return jnp.where(x > 0, x, NEG_SLOPE * x)


def block_stage2_kernel(x_ref, w1_ref, b1_ref, w2_ref, b2_ref, w3_ref, b3_ref,
                        o_ref, *, tb, l_pad, l_valid):
    """One batch-tile per grid step.

    x_ref : (tb*l_pad, C)  rows of `tb` batch elements (length padded to l_pad)
    w1/w3 : (3, C, C)      tap-major k=3 weights, laid out (k, Cin, Cout)
    w2    : (C, C)         1x1 conv as a plain matmul, (Cin, Cout)
    b*    : (1, C)
    o_ref : (tb*l_pad, C)
    """
    m = tb * l_pad

    # Per-row position inside its own batch element (conv boundary handling).
    pos = lax.broadcasted_iota(jnp.int32, (tb, l_pad, C), 1).reshape(m, C)
    not_first = pos != 0             # row l has a valid l-1 neighbour
    not_last = pos != (l_pad - 1)    # row l has a valid l+1 neighbour

    def conv3(v, w_ref, b_ref):
        # y[l] = v[l-1] @ w[0] + v[l] @ w[1] + v[l+1] @ w[2] + b  (zero-padded)
        p0 = jnp.dot(v, w_ref[0], preferred_element_type=jnp.float32)
        p1 = jnp.dot(v, w_ref[1], preferred_element_type=jnp.float32)
        p2 = jnp.dot(v, w_ref[2], preferred_element_type=jnp.float32)
        sh0 = jnp.where(not_first, pltpu.roll(p0, 1, 0), 0.0)      # -> p0[l-1]
        sh2 = jnp.where(not_last, pltpu.roll(p2, m - 1, 0), 0.0)   # -> p2[l+1]
        return sh0 + p1 + sh2 + b_ref[...]

    x = x_ref[...].astype(jnp.float32)

    h = _leaky(conv3(x, w1_ref, b1_ref))
    h = _leaky(jnp.dot(h, w2_ref[...], preferred_element_type=jnp.float32)
               + b2_ref[...])
    if l_pad != l_valid:
        # Rows that only exist because of the multiple-of-8 length pad must be
        # zeroed so the second k=3 conv sees true zero padding at row l_valid-1.
        h = jnp.where(pos < l_valid, h, 0.0)
    y = _leaky(conv3(h, w3_ref, b3_ref))

    # Dropout(p=0.4): eval-mode identity (see TODO at top).
    o_ref[...] = y.astype(o_ref.dtype)


def _pick_tb(n, l_pad, max_rows=2048):
    """Batch elements per grid step: big enough to feed the MXU / amortize the
    per-step overhead, small enough for VMEM, and >=2 grid steps when N>1 so
    both v7x TensorCores get work."""
    tb = max(1, min(n, max_rows // max(l_pad, 1)))
    if n > 1:
        tb = min(tb, pl.cdiv(n, 2))
    return tb


def block_stage_2_nlc(x_nlc, params):
    """Core entry point, channels-last: x_nlc is (N, L, 128) float32."""
    n, l, cin = x_nlc.shape
    assert cin == C
    l_pad = ((l + 7) // 8) * 8
    if l_pad != l:
        x_nlc = jnp.pad(x_nlc, ((0, 0), (0, l_pad - l), (0, 0)))
    x2 = x_nlc.reshape(n * l_pad, C)   # contiguous leading-dim merge (free)

    # torch Conv1d weight is (Cout, Cin, K) -> tap-major (K, Cin, Cout).
    w1 = jnp.transpose(params["w1"], (2, 1, 0))
    w2 = jnp.transpose(params["w2"][:, :, 0], (1, 0))
    w3 = jnp.transpose(params["w3"], (2, 1, 0))
    b1 = params["b1"].reshape(1, C)
    b2 = params["b2"].reshape(1, C)
    b3 = params["b3"].reshape(1, C)

    tb = _pick_tb(n, l_pad)
    m_blk = tb * l_pad
    grid = (pl.cdiv(n, tb),)
    # TODO(synk): for very long sequences (TB*L >> 4K rows) add an L-tile grid
    # axis with halo rows so blocks keep fitting v7x's 64 MiB VMEM.

    kernel = functools.partial(block_stage2_kernel,
                               tb=tb, l_pad=l_pad, l_valid=l)

    out2 = pl.pallas_call(
        kernel,
        out_shape=jax.ShapeDtypeStruct((n * l_pad, C), x_nlc.dtype),
        grid_spec=pltpu.PrefetchScalarGridSpec(
            num_scalar_prefetch=0,
            grid=grid,
            in_specs=[
                pl.BlockSpec((m_blk, C), lambda i: (i, 0)),     # x rows
                pl.BlockSpec((3, C, C), lambda i: (0, 0, 0)),   # w1 (resident)
                pl.BlockSpec((1, C),    lambda i: (0, 0)),      # b1
                pl.BlockSpec((C, C),    lambda i: (0, 0)),      # w2
                pl.BlockSpec((1, C),    lambda i: (0, 0)),      # b2
                pl.BlockSpec((3, C, C), lambda i: (0, 0, 0)),   # w3
                pl.BlockSpec((1, C),    lambda i: (0, 0)),      # b3
            ],
            out_specs=pl.BlockSpec((m_blk, C), lambda i: (i, 0)),
        ),
        compiler_params=pltpu.CompilerParams(
            dimension_semantics=("parallel",),
            vmem_limit_bytes=32 * 1024 * 1024),
    )(x2, w1, b1, w2, b2, w3, b3)

    out = out2.reshape(n, l_pad, C)
    if l_pad != l:
        out = out[:, :l, :]
    return out


def block_stage_2(x_ncl, params):
    """PyTorch-layout wrapper: x_ncl is (N, 128, L), returns (N, 128, L).

    TODO(synk): in a full model keep the (N, L, C) activation layout across
    adjacent stages and call block_stage_2_nlc directly; the two transposes
    here are a full HBM round trip each and exist only for NCL compatibility.
    """
    x_nlc = jnp.transpose(x_ncl, (0, 2, 1))
    out_nlc = block_stage_2_nlc(x_nlc, params)
    return jnp.transpose(out_nlc, (0, 2, 1))


# ----------------------- pure-JAX reference (NCL) --------------------------
def reference(x_ncl, params):
    def conv1d(x, w, b, pad):
        y = lax.conv_general_dilated(
            x, w, window_strides=(1,), padding=[(pad, pad)],
            dimension_numbers=("NCH", "OIH", "NCH"))
        return y + b.reshape(1, C, 1)

    h = _leaky(conv1d(x_ncl, params["w1"], params["b1"], 1))
    h = _leaky(conv1d(h, params["w2"], params["b2"], 0))
    h = _leaky(conv1d(h, params["w3"], params["b3"], 1))
    return h  # eval-mode dropout = identity


def init_params(key):
    """Deterministic init mimicking torch Conv1d default (uniform +-1/sqrt(fan_in))."""
    ks = jax.random.split(key, 6)

    def u(k, shape, fan_in):
        bound = 1.0 / jnp.sqrt(fan_in)
        return jax.random.uniform(k, shape, jnp.float32, -bound, bound)

    return {
        "w1": u(ks[0], (C, C, 3), C * 3), "b1": u(ks[1], (C,), C * 3),
        "w2": u(ks[2], (C, C, 1), C * 1), "b2": u(ks[3], (C,), C * 1),
        "w3": u(ks[4], (C, C, 3), C * 3), "b3": u(ks[5], (C,), C * 3),
    }


if __name__ == "__main__":
    key = jax.random.PRNGKey(0)
    k_x, k_p = jax.random.split(key)

    N, L = 2, 16
    x = jax.random.normal(k_x, (N, C, L), jnp.float32)      # torch NCL layout
    params = init_params(k_p)

    out = jax.jit(block_stage_2)(x, params)
    out = jax.block_until_ready(out)

    ref = reference(x, params)
    assert out.shape == (N, C, L)
    max_err = float(jnp.max(jnp.abs(out - ref)))
    assert jnp.allclose(out, ref, atol=1e-4, rtol=1e-4), max_err

    print("KERNEL_OK")
</pallas_src>

<mosaic_0001>
module attributes {stable_mosaic.version = 11 : i64} {
  func.func @block_stage2_kernel(%arg0: i32, %arg1: memref<16x128xf32, #tpu.memory_space<vmem>>, %arg2: memref<3x128x128xf32, #tpu.memory_space<vmem>>, %arg3: memref<1x128xf32, #tpu.memory_space<vmem>>, %arg4: memref<128x128xf32, #tpu.memory_space<vmem>>, %arg5: memref<1x128xf32, #tpu.memory_space<vmem>>, %arg6: memref<3x128x128xf32, #tpu.memory_space<vmem>>, %arg7: memref<1x128xf32, #tpu.memory_space<vmem>>, %arg8: memref<16x128xf32, #tpu.memory_space<vmem>>) attributes {dimension_semantics = [#tpu.dimension_semantics<parallel>], iteration_bounds = array<i64: 2>, scalar_prefetch = 0 : i64, scratch_operands = 0 : i64, tpu.core_type = #tpu.core_type<tc>, window_params = [{transform_indices = @transform_0, window_bounds = array<i64: 16, 128>}, {pipeline_mode = #tpu.pipeline_mode<synchronous>, transform_indices = @transform_1, window_bounds = array<i64: 3, 128, 128>}, {pipeline_mode = #tpu.pipeline_mode<synchronous>, transform_indices = @transform_2, window_bounds = array<i64: 1, 128>}, {pipeline_mode = #tpu.pipeline_mode<synchronous>, transform_indices = @transform_3, window_bounds = array<i64: 128, 128>}, {pipeline_mode = #tpu.pipeline_mode<synchronous>, transform_indices = @transform_4, window_bounds = array<i64: 1, 128>}, {pipeline_mode = #tpu.pipeline_mode<synchronous>, transform_indices = @transform_5, window_bounds = array<i64: 3, 128, 128>}, {pipeline_mode = #tpu.pipeline_mode<synchronous>, transform_indices = @transform_6, window_bounds = array<i64: 1, 128>}, {transform_indices = @transform_7, window_bounds = array<i64: 16, 128>}]} {
    %0 = tpu.iota {dimensions = array<i32: 1>} : vector<1x16x128xi32>
    %1 = vector.shape_cast %0 : vector<1x16x128xi32> to vector<16x128xi32>
    %c0_i32 = arith.constant 0 : i32
    %2 = vector.broadcast %c0_i32 : i32 to vector<16x128xi32>
    %3 = arith.cmpi ne, %1, %2 : vector<16x128xi32>
    %c15_i32 = arith.constant 15 : i32
    %4 = vector.broadcast %c15_i32 : i32 to vector<16x128xi32>
    %5 = arith.cmpi ne, %1, %4 : vector<16x128xi32>
    %c0 = arith.constant 0 : index
    %c0_0 = arith.constant 0 : index
    %6 = vector.load %arg1[%c0, %c0_0] : memref<16x128xf32, #tpu.memory_space<vmem>>, vector<16x128xf32>
    %c0_1 = arith.constant 0 : index
    %c0_2 = arith.constant 0 : index
    %c0_3 = arith.constant 0 : index
    %7 = vector.load %arg2[%c0_1, %c0_2, %c0_3] : memref<3x128x128xf32, #tpu.memory_space<vmem>>, vector<1x128x128xf32>
    %8 = vector.shape_cast %7 : vector<1x128x128xf32> to vector<128x128xf32>
    %cst = arith.constant dense<0.000000e+00> : vector<16x128xf32>
    %9 = tpu.matmul %6, %8, %cst {dimension_numbers = #tpu.dot_dimension_numbers<[1], [0], [0], [1], [0, 0, 1, 1], [], []>} : vector<16x128xf32>, vector<128x128xf32>, vector<16x128xf32> -> vector<16x128xf32>
    %c1 = arith.constant 1 : index
    %c0_4 = arith.constant 0 : index
    %c0_5 = arith.constant 0 : index
    %10 = vector.load %arg2[%c1, %c0_4, %c0_5] : memref<3x128x128xf32, #tpu.memory_space<vmem>>, vector<1x128x128xf32>
    %11 = vector.shape_cast %10 : vector<1x128x128xf32> to vector<128x128xf32>
    %cst_6 = arith.constant dense<0.000000e+00> : vector<16x128xf32>
    %12 = tpu.matmul %6, %11, %cst_6 {dimension_numbers = #tpu.dot_dimension_numbers<[1], [0], [0], [1], [0, 0, 1, 1], [], []>} : vector<16x128xf32>, vector<128x128xf32>, vector<16x128xf32> -> vector<16x128xf32>
    %c2 = arith.constant 2 : index
    %c0_7 = arith.constant 0 : index
    %c0_8 = arith.constant 0 : index
    %13 = vector.load %arg2[%c2, %c0_7, %c0_8] : memref<3x128x128xf32, #tpu.memory_space<vmem>>, vector<1x128x128xf32>
    %14 = vector.shape_cast %13 : vector<1x128x128xf32> to vector<128x128xf32>
    %cst_9 = arith.constant dense<0.000000e+00> : vector<16x128xf32>
    %15 = tpu.matmul %6, %14, %cst_9 {dimension_numbers = #tpu.dot_dimension_numbers<[1], [0], [0], [1], [0, 0, 1, 1], [], []>} : vector<16x128xf32>, vector<128x128xf32>, vector<16x128xf32> -> vector<16x128xf32>
    %c1_i32 = arith.constant 1 : i32
    %16 = tpu.dynamic_rotate %9 by %c1_i32 dim 0 : vector<16x128xf32>, i32 -> vector<16x128xf32>
    %cst_10 = arith.constant 0.000000e+00 : f32
    %17 = vector.broadcast %cst_10 : f32 to vector<16x128xf32>
    %18 = arith.select %3, %16, %17 : vector<16x128xi1>, vector<16x128xf32>
    %c15_i32_11 = arith.constant 15 : i32
    %19 = tpu.dynamic_rotate %15 by %c15_i32_11 dim 0 : vector<16x128xf32>, i32 -> vector<16x128xf32>
    %cst_12 = arith.constant 0.000000e+00 : f32
    %20 = vector.broadcast %cst_12 : f32 to vector<16x128xf32>
    %21 = arith.select %5, %19, %20 : vector<16x128xi1>, vector<16x128xf32>
    %22 = arith.addf %18, %12 : vector<16x128xf32>
    %23 = arith.addf %22, %21 : vector<16x128xf32>
    %c0_13 = arith.constant 0 : index
    %c0_14 = arith.constant 0 : index
    %24 = vector.load %arg3[%c0_13, %c0_14] : memref<1x128xf32, #tpu.memory_space<vmem>>, vector<1x128xf32>
    %25 = vector.broadcast %24 : vector<1x128xf32> to vector<16x128xf32>
    %26 = arith.addf %23, %25 : vector<16x128xf32>
    %cst_15 = arith.constant 0.000000e+00 : f32
    %27 = vector.broadcast %cst_15 : f32 to vector<16x128xf32>
    %28 = arith.cmpf ogt, %26, %27 : vector<16x128xf32>
    %cst_16 = arith.constant 5.000000e-02 : f32
    %29 = vector.broadcast %cst_16 : f32 to vector<16x128xf32>
    %30 = arith.mulf %29, %26 : vector<16x128xf32>
    %31 = arith.select %28, %26, %30 : vector<16x128xi1>, vector<16x128xf32>
    %c0_17 = arith.constant 0 : index
    %c0_18 = arith.constant 0 : index
    %32 = vector.load %arg4[%c0_17, %c0_18] : memref<128x128xf32, #tpu.memory_space<vmem>>, vector<128x128xf32>
    %cst_19 = arith.constant dense<0.000000e+00> : vector<16x128xf32>
    %33 = tpu.matmul %31, %32, %cst_19 {dimension_numbers = #tpu.dot_dimension_numbers<[1], [0], [0], [1], [0, 0, 1, 1], [], []>} : vector<16x128xf32>, vector<128x128xf32>, vector<16x128xf32> -> vector<16x128xf32>
    %c0_20 = arith.constant 0 : index
    %c0_21 = arith.constant 0 : index
    %34 = vector.load %arg5[%c0_20, %c0_21] : memref<1x128xf32, #tpu.memory_space<vmem>>, vector<1x128xf32>
    %35 = vector.broadcast %34 : vector<1x128xf32> to vector<16x128xf32>
    %36 = arith.addf %33, %35 : vector<16x128xf32>
    %cst_22 = arith.constant 0.000000e+00 : f32
    %37 = vector.broadcast %cst_22 : f32 to vector<16x128xf32>
    %38 = arith.cmpf ogt, %36, %37 : vector<16x128xf32>
    %cst_23 = arith.constant 5.000000e-02 : f32
    %39 = vector.broadcast %cst_23 : f32 to vector<16x128xf32>
    %40 = arith.mulf %39, %36 : vector<16x128xf32>
    %41 = arith.select %38, %36, %40 : vector<16x128xi1>, vector<16x128xf32>
    %c0_24 = arith.constant 0 : index
    %c0_25 = arith.constant 0 : index
    %c0_26 = arith.constant 0 : index
    %42 = vector.load %arg6[%c0_24, %c0_25, %c0_26] : memref<3x128x128xf32, #tpu.memory_space<vmem>>, vector<1x128x128xf32>
    %43 = vector.shape_cast %42 : vector<1x128x128xf32> to vector<128x128xf32>
    %cst_27 = arith.constant dense<0.000000e+00> : vector<16x128xf32>
    %44 = tpu.matmul %41, %43, %cst_27 {dimension_numbers = #tpu.dot_dimension_numbers<[1], [0], [0], [1], [0, 0, 1, 1], [], []>} : vector<16x128xf32>, vector<128x128xf32>, vector<16x128xf32> -> vector<16x128xf32>
    %c1_28 = arith.constant 1 : index
    %c0_29 = arith.constant 0 : index
    %c0_30 = arith.constant 0 : index
    %45 = vector.load %arg6[%c1_28, %c0_29, %c0_30] : memref<3x128x128xf32, #tpu.memory_space<vmem>>, vector<1x128x128xf32>
    %46 = vector.shape_cast %45 : vector<1x128x128xf32> to vector<128x128xf32>
    %cst_31 = arith.constant dense<0.000000e+00> : vector<16x128xf32>
    %47 = tpu.matmul %41, %46, %cst_31 {dimension_numbers = #tpu.dot_dimension_numbers<[1], [0], [0], [1], [0, 0, 1, 1], [], []>} : vector<16x128xf32>, vector<128x128xf32>, vector<16x128xf32> -> vector<16x128xf32>
    %c2_32 = arith.constant 2 : index
    %c0_33 = arith.constant 0 : index
    %c0_34 = arith.constant 0 : index
    %48 = vector.load %arg6[%c2_32, %c0_33, %c0_34] : memref<3x128x128xf32, #tpu.memory_space<vmem>>, vector<1x128x128xf32>
    %49 = vector.shape_cast %48 : vector<1x128x128xf32> to vector<128x128xf32>
    %cst_35 = arith.constant dense<0.000000e+00> : vector<16x128xf32>
    %50 = tpu.matmul %41, %49, %cst_35 {dimension_numbers = #tpu.dot_dimension_numbers<[1], [0], [0], [1], [0, 0, 1, 1], [], []>} : vector<16x128xf32>, vector<128x128xf32>, vector<16x128xf32> -> vector<16x128xf32>
    %c1_i32_36 = arith.constant 1 : i32
    %51 = tpu.dynamic_rotate %44 by %c1_i32_36 dim 0 : vector<16x128xf32>, i32 -> vector<16x128xf32>
    %cst_37 = arith.constant 0.000000e+00 : f32
    %52 = vector.broadcast %cst_37 : f32 to vector<16x128xf32>
    %53 = arith.select %3, %51, %52 : vector<16x128xi1>, vector<16x128xf32>
    %c15_i32_38 = arith.constant 15 : i32
    %54 = tpu.dynamic_rotate %50 by %c15_i32_38 dim 0 : vector<16x128xf32>, i32 -> vector<16x128xf32>
    %cst_39 = arith.constant 0.000000e+00 : f32
    %55 = vector.broadcast %cst_39 : f32 to vector<16x128xf32>
    %56 = arith.select %5, %54, %55 : vector<16x128xi1>, vector<16x128xf32>
    %57 = arith.addf %53, %47 : vector<16x128xf32>
    %58 = arith.addf %57, %56 : vector<16x128xf32>
    %c0_40 = arith.constant 0 : index
    %c0_41 = arith.constant 0 : index
    %59 = vector.load %arg7[%c0_40, %c0_41] : memref<1x128xf32, #tpu.memory_space<vmem>>, vector<1x128xf32>
    %60 = vector.broadcast %59 : vector<1x128xf32> to vector<16x128xf32>
    %61 = arith.addf %58, %60 : vector<16x128xf32>
    %cst_42 = arith.constant 0.000000e+00 : f32
    %62 = vector.broadcast %cst_42 : f32 to vector<16x128xf32>
    %63 = arith.cmpf ogt, %61, %62 : vector<16x128xf32>
    %cst_43 = arith.constant 5.000000e-02 : f32
    %64 = vector.broadcast %cst_43 : f32 to vector<16x128xf32>
    %65 = arith.mulf %64, %61 : vector<16x128xf32>
    %66 = arith.select %63, %61, %65 : vector<16x128xi1>, vector<16x128xf32>
    %c0_44 = arith.constant 0 : index
    %c0_45 = arith.constant 0 : index
    %67 = vector.load %arg8[%c0_44, %c0_45] : memref<16x128xf32, #tpu.memory_space<vmem>>, vector<16x128xf32>
    tpu.vector_store %arg8[%c0_44, %c0_45], %66 {strides = array<i32>} : memref<16x128xf32, #tpu.memory_space<vmem>>, vector<16x128xf32>,
    return
  }
  func.func @transform_0(%arg0: i32) -> (i32, i32) {
    %c0_i32 = arith.constant 0 : i32
    %c0_i32_0 = arith.constant 0 : i32
    return %arg0, %c0_i32 : i32, i32
  }
  func.func @transform_1(%arg0: i32) -> (i32, i32, i32) {
    %c0_i32 = arith.constant 0 : i32
    %c0_i32_0 = arith.constant 0 : i32
    %c0_i32_1 = arith.constant 0 : i32
    %c0_i32_2 = arith.constant 0 : i32
    return %c0_i32, %c0_i32_0, %c0_i32_1 : i32, i32, i32
  }
  func.func @transform_2(%arg0: i32) -> (i32, i32) {
    %c0_i32 = arith.constant 0 : i32
    %c0_i32_0 = arith.constant 0 : i32
    %c0_i32_1 = arith.constant 0 : i32
    return %c0_i32, %c0_i32_0 : i32, i32
  }
  func.func @transform_3(%arg0: i32) -> (i32, i32) {
    %c0_i32 = arith.constant 0 : i32
    %c0_i32_0 = arith.constant 0 : i32
    %c0_i32_1 = arith.constant 0 : i32
    return %c0_i32, %c0_i32_0 : i32, i32
  }
  func.func @transform_4(%arg0: i32) -> (i32, i32) {
    %c0_i32 = arith.constant 0 : i32
    %c0_i32_0 = arith.constant 0 : i32
    %c0_i32_1 = arith.constant 0 : i32
    return %c0_i32, %c0_i32_0 : i32, i32
  }
  func.func @transform_5(%arg0: i32) -> (i32, i32, i32) {
    %c0_i32 = arith.constant 0 : i32
    %c0_i32_0 = arith.constant 0 : i32
    %c0_i32_1 = arith.constant 0 : i32
    %c0_i32_2 = arith.constant 0 : i32
    return %c0_i32, %c0_i32_0, %c0_i32_1 : i32, i32, i32
  }
  func.func @transform_6(%arg0: i32) -> (i32, i32) {
    %c0_i32 = arith.constant 0 : i32
    %c0_i32_0 = arith.constant 0 : i32
    %c0_i32_1 = arith.constant 0 : i32
    return %c0_i32, %c0_i32_0 : i32, i32
  }
  func.func @transform_7(%arg0: i32) -> (i32, i32) {
    %c0_i32 = arith.constant 0 : i32
    %c0_i32_0 = arith.constant 0 : i32
    return %arg0, %c0_i32 : i32, i32
  }
}

</mosaic_0001>

<llo_original>
// kernel: block_stage_2.1
$region0: #{block_stage_2.1}
  #allocation0 [shape = 'u32[]', space=smem, size = 0x4, offset = 0x4, fixed_abs, tag = 'smem constant byte address 0x4 - core index']
  #allocation1 [shape = 'u32[144,128]{1,0:T(1,128)}', space=vmem, size = 0x12000, scoped, tag = 'internal scratch']
  %s0 = inlined_call_operand.vmem [shape: f32[32,128], index: 0, kind: input, shape index: {}]
  %s1 = inlined_call_operand.vmem [shape: f32[3,128,128], index: 1, kind: input, shape index: {}]
  %s2 = inlined_call_operand.vmem [shape: f32[1,128], index: 2, kind: input, shape index: {}]
  %s3 = inlined_call_operand.vmem [shape: f32[128,128], index: 3, kind: input, shape index: {}]
  %s4 = inlined_call_operand.vmem [shape: f32[1,128], index: 4, kind: input, shape index: {}]
  %s5 = inlined_call_operand.vmem [shape: f32[3,128,128], index: 5, kind: input, shape index: {}]
  %s6 = inlined_call_operand.vmem [shape: f32[1,128], index: 6, kind: input, shape index: {}]
  %s7 = inlined_call_operand.hbm [shape: f32[32,128], index: 7, kind: output, shape index: {}]
  %s8 = sld [smem:[#allocation0]]
  $region61: #{block_stage_2.1} parent=0
    _
  %s10 = ssub.s32 1, %s8
  %s11 = scalar_select 0, %s10, %s8
  $region1: #{block_stage_2.1} parent=0
    #allocation2 [shape = 'u8[16384]{0}', space=vmem, size = 0x4000, scoped, tag = 'output window, operand 0']
    #allocation3 [shape = 's32[2]{0}', space=sflag, size = 0x8, scoped, tag = 'scoped memory for block_stage_2.1']
    %12 = vsyncpa [#allocation3], 0
    %s13 = scalar_lea.sflag [#allocation3], 1
    %14 = vsyncpa %s13, 0
    loop: start=0, step=1, limit=4
    $region2: #{block_stage_2.1} parent=1 // loop_pre_header
      _
    $region3: #{block_stage_2.1} parent=1 // loop_header
      %s16 = sphi 0, %s20
      %p17 = scmp.ge.s32.totalorder %s16, 4
      %s26 = sphi 0, %s28
      %s29 = sphi 0, %s26
      %s30 = sphi 0, %s29
      %s46 = sphi 0, %s30
      %s50 = sphi 0, %s50
      %s52 = sphi 0, %s50
      %s53 = sphi 0, %s52
      %s67 = sphi 0, %s53
      %s71 = sphi 0, %s71
      %s73 = sphi 0, %s71
      %s74 = sphi 0, %s73
      %s88 = sphi 0, %s74
      %s92 = sphi 0, %s92
      %s94 = sphi 0, %s92
      %s95 = sphi 0, %s94
      %s109 = sphi 0, %s95
      %s113 = sphi 0, %s113
      %s115 = sphi 0, %s113
      %s116 = sphi 0, %s115
      %s130 = sphi 0, %s116
      %s134 = sphi 0, %s134
      %s136 = sphi 0, %s134
      %s137 = sphi 0, %s136
      %s151 = sphi 0, %s137
      %s155 = sphi 0, %s155
      %s157 = sphi 0, %s155
      %s158 = sphi 0, %s157
      %s172 = sphi 0, %s158
      %s178 = sphi 0, %s180
      %s181 = sphi 0, %s178
      %s182 = sphi 0, %s181
      %s198 = sphi 0, %s182
    $region4: #{block_stage_2.1} parent=1 // loop_header_branch
      %19 = sbr.rel (%p17) target = $region8
    $region5: #{block_stage_2.1} parent=1 // loop_body
      %s21 = ssub.s32 %s16, 1
      %s22 = ssub.s32 %s16, 2
      %s23 = sadd.s32 %s16, 1
      %s24 = ssub.s32 %s16, %s23
      %p25 = scmp.eq.s32.totalorder %s24, 0
      %s27 = sadd.s32 %s26, 1
      %s28 = scalar_select %p25, %s26, %s27
      %p31 = pneg %p25
      %p32 = scmp.eq.s32.totalorder %s16, 1
      %p33 = por %p31, %p32
      %p34 = scmp.ne.s32.totalorder %s26, %s29
      %p35 = scmp.eq.s32.totalorder %s16, 0
      %p36 = por %p34, %p35
      %p37 = scmp.ne.s32.totalorder %s26, %s29
      %p38 = scmp.eq.s32.totalorder %s21, 1
      %p39 = por %p37, %p38
      %p40 = scmp.ne.s32.totalorder %s29, %s30
      %p41 = scmp.eq.s32.totalorder %s21, 0
      %p42 = por %p40, %p41
      %p43 = scmp.ne.s32.totalorder %s29, %s30
      %p44 = scmp.eq.s32.totalorder %s22, 1
      %p45 = por %p43, %p44
      %p47 = scmp.ne.s32.totalorder %s30, %s46
      %p48 = scmp.eq.s32.totalorder %s22, 0
      %p49 = por %p47, %p48
      %s51 = sadd.s32 %s50, 1
      %p54 = scmp.eq.s32.totalorder %s16, 1
      %p55 = scmp.ne.s32.totalorder %s50, %s52
      %p56 = scmp.eq.s32.totalorder %s16, 0
      %p57 = por %p55, %p56
      %p58 = scmp.ne.s32.totalorder %s50, %s52
      %p59 = scmp.eq.s32.totalorder %s21, 1
      %p60 = por %p58, %p59
      %p61 = scmp.ne.s32.totalorder %s52, %s53
      %p62 = scmp.eq.s32.totalorder %s21, 0
      %p63 = por %p61, %p62
      %p64 = scmp.ne.s32.totalorder %s52, %s53
      %p65 = scmp.eq.s32.totalorder %s22, 1
      %p66 = por %p64, %p65
      %p68 = scmp.ne.s32.totalorder %s53, %s67
      %p69 = scmp.eq.s32.totalorder %s22, 0
      %p70 = por %p68, %p69
      %s72 = sadd.s32 %s71, 1
      %p75 = scmp.eq.s32.totalorder %s16, 1
      %p76 = scmp.ne.s32.totalorder %s71, %s73
      %p77 = scmp.eq.s32.totalorder %s16, 0
      %p78 = por %p76, %p77
      %p79 = scmp.ne.s32.totalorder %s71, %s73
      %p80 = scmp.eq.s32.totalorder %s21, 1
      %p81 = por %p79, %p80
      %p82 = scmp.ne.s32.totalorder %s73, %s74
      %p83 = scmp.eq.s32.totalorder %s21, 0
      %p84 = por %p82, %p83
      %p85 = scmp.ne.s32.totalorder %s73, %s74
      %p86 = scmp.eq.s32.totalorder %s22, 1
      %p87 = por %p85, %p86
      %p89 = scmp.ne.s32.totalorder %s74, %s88
      %p90 = scmp.eq.s32.totalorder %s22, 0
      %p91 = por %p89, %p90
      %s93 = sadd.s32 %s92, 1
      %p96 = scmp.eq.s32.totalorder %s16, 1
      %p97 = scmp.ne.s32.totalorder %s92, %s94
      %p98 = scmp.eq.s32.totalorder %s16, 0
      %p99 = por %p97, %p98
      %p100 = scmp.ne.s32.totalorder %s92, %s94
      %p101 = scmp.eq.s32.totalorder %s21, 1
      %p102 = por %p100, %p101
      %p103 = scmp.ne.s32.totalorder %s94, %s95
      %p104 = scmp.eq.s32.totalorder %s21, 0
      %p105 = por %p103, %p104
      %p106 = scmp.ne.s32.totalorder %s94, %s95
      %p107 = scmp.eq.s32.totalorder %s22, 1
      %p108 = por %p106, %p107
      %p110 = scmp.ne.s32.totalorder %s95, %s109
      %p111 = scmp.eq.s32.totalorder %s22, 0
      %p112 = por %p110, %p111
      %s114 = sadd.s32 %s113, 1
      %p117 = scmp.eq.s32.totalorder %s16, 1
      %p118 = scmp.ne.s32.totalorder %s113, %s115
      %p119 = scmp.eq.s32.totalorder %s16, 0
      %p120 = por %p118, %p119
      %p121 = scmp.ne.s32.totalorder %s113, %s115
      %p122 = scmp.eq.s32.totalorder %s21, 1
      %p123 = por %p121, %p122
      %p124 = scmp.ne.s32.totalorder %s115, %s116
      %p125 = scmp.eq.s32.totalorder %s21, 0
      %p126 = por %p124, %p125
      %p127 = scmp.ne.s32.totalorder %s115, %s116
      %p128 = scmp.eq.s32.totalorder %s22, 1
      %p129 = por %p127, %p128
      %p131 = scmp.ne.s32.totalorder %s116, %s130
      %p132 = scmp.eq.s32.totalorder %s22, 0
      %p133 = por %p131, %p132
      %s135 = sadd.s32 %s134, 1
      %p138 = scmp.eq.s32.totalorder %s16, 1
      %p139 = scmp.ne.s32.totalorder %s134, %s136
      %p140 = scmp.eq.s32.totalorder %s16, 0
      %p141 = por %p139, %p140
      %p142 = scmp.ne.s32.totalorder %s134, %s136
      %p143 = scmp.eq.s32.totalorder %s21, 1
      %p144 = por %p142, %p143
      %p145 = scmp.ne.s32.totalorder %s136, %s137
      %p146 = scmp.eq.s32.totalorder %s21, 0
      %p147 = por %p145, %p146
      %p148 = scmp.ne.s32.totalorder %s136, %s137
      %p149 = scmp.eq.s32.totalorder %s22, 1
      %p150 = por %p148, %p149
      %p152 = scmp.ne.s32.totalorder %s137, %s151
      %p153 = scmp.eq.s32.totalorder %s22, 0
      %p154 = por %p152, %p153
      %s156 = sadd.s32 %s155, 1
      %p159 = scmp.eq.s32.totalorder %s16, 1
      %p160 = scmp.ne.s32.totalorder %s155, %s157
      %p161 = scmp.eq.s32.totalorder %s16, 0
      %p162 = por %p160, %p161
      %p163 = scmp.ne.s32.totalorder %s155, %s157
      %p164 = scmp.eq.s32.totalorder %s21, 1
      %p165 = por %p163, %p164
      %p166 = scmp.ne.s32.totalorder %s157, %s158
      %p167 = scmp.eq.s32.totalorder %s21, 0
      %p168 = por %p166, %p167
      %p169 = scmp.ne.s32.totalorder %s157, %s158
      %p170 = scmp.eq.s32.totalorder %s22, 1
      %p171 = por %p169, %p170
      %p173 = scmp.ne.s32.totalorder %s158, %s172
      %p174 = scmp.eq.s32.totalorder %s22, 0
      %p175 = por %p173, %p174
      %s176 = ssub.s32 %s16, %s23
      %p177 = scmp.eq.s32.totalorder %s176, 0
      %s179 = sadd.s32 %s178, 1
      %s180 = scalar_select %p177, %s178, %s179
      %p183 = pneg %p177
      %p184 = scmp.eq.s32.totalorder %s16, 1
      %p185 = por %p183, %p184
      %p186 = scmp.ne.s32.totalorder %s178, %s181
      %p187 = scmp.eq.s32.totalorder %s16, 0
      %p188 = por %p186, %p187
      %p189 = scmp.ne.s32.totalorder %s178, %s181
      %p190 = scmp.eq.s32.totalorder %s21, 1
      %p191 = por %p189, %p190
      %p192 = scmp.ne.s32.totalorder %s181, %s182
      %p193 = scmp.eq.s32.totalorder %s21, 0
      %p194 = por %p192, %p193
      %p195 = scmp.ne.s32.totalorder %s181, %s182
      %p196 = scmp.eq.s32.totalorder %s22, 1
      %p197 = por %p195, %p196
      %p199 = scmp.ne.s32.totalorder %s182, %s198
      %p200 = scmp.eq.s32.totalorder %s22, 0
      %p201 = por %p199, %p200
      %p202 = scmp.le.s32.totalorder 1, %s16
      %p203 = scmp.lt.s32.totalorder %s16, 3
      %p204 = pnand %p202, %p203
      %p205 = pneg %p204
      // Predicated region
      $region9: #{block_stage_2.1} parent=5 // pred_check
        _
      $region10: #{block_stage_2.1} parent=5 // pred_check_branch
        %207 = sbr.rel (%p204) target = $region12
      $region11: #{block_stage_2.1} parent=5 // pred_region
        %s208 = ssub.s32 %s16, 1
        // Predicated region
        $region13: #{block_stage_2.1} parent=11 // pred_check
          %p209 = pneg %p63
        $region14: #{block_stage_2.1} parent=11 // pred_check_branch
          %211 = sbr.rel (%p209) target = $region16
        $region15: #{block_stage_2.1} parent=11 // pred_region
          _
        $region16: #{block_stage_2.1} parent=11 // pred_fallthru
          _
        // Predicated region
        $region17: #{block_stage_2.1} parent=11 // pred_check
          %p212 = pneg %p84
        $region18: #{block_stage_2.1} parent=11 // pred_check_branch
          %214 = sbr.rel (%p212) target = $region20
        $region19: #{block_stage_2.1} parent=11 // pred_region
          _
        $region20: #{block_stage_2.1} parent=11 // pred_fallthru
          _
        // Predicated region
        $region21: #{block_stage_2.1} parent=11 // pred_check
          %p215 = pneg %p105
        $region22: #{block_stage_2.1} parent=11 // pred_check_branch
          %217 = sbr.rel (%p215) target = $region24
        $region23: #{block_stage_2.1} parent=11 // pred_region
          _
        $region24: #{block_stage_2.1} parent=11 // pred_fallthru
          _
        // Predicated region
        $region25: #{block_stage_2.1} parent=11 // pred_check
          %p218 = pneg %p126
        $region26: #{block_stage_2.1} parent=11 // pred_check_branch
          %220 = sbr.rel (%p218) target = $region28
        $region27: #{block_stage_2.1} parent=11 // pred_region
          _
        $region28: #{block_stage_2.1} parent=11 // pred_fallthru
          _
        // Predicated region
        $region29: #{block_stage_2.1} parent=11 // pred_check
          %p221 = pneg %p147
        $region30: #{block_stage_2.1} parent=11 // pred_check_branch
          %223 = sbr.rel (%p221) target = $region32
        $region31: #{block_stage_2.1} parent=11 // pred_region
          _
        $region32: #{block_stage_2.1} parent=11 // pred_fallthru
          _
        // Predicated region
        $region33: #{block_stage_2.1} parent=11 // pred_check
          %p224 = pneg %p168
        $region34: #{block_stage_2.1} parent=11 // pred_check_branch
          %226 = sbr.rel (%p224) target = $region36
        $region35: #{block_stage_2.1} parent=11 // pred_region
          _
        $region36: #{block_stage_2.1} parent=11 // pred_fallthru
          _
      $region12: #{block_stage_2.1} parent=5 // pred_fallthru
        _
      %p227 = scmp.lt.s32.totalorder %s16, 2
      // Predicated region
      $region37: #{block_stage_2.1} parent=5 // pred_check
        %p228 = pneg %p227
      $region38: #{block_stage_2.1} parent=5 // pred_check_branch
        %230 = sbr.rel (%p228) target = $region40
      $region39: #{block_stage_2.1} parent=5 // pred_region
        // Predicated region
        $region41: #{block_stage_2.1} parent=39 // pred_check
          %p231 = pneg %p36
        $region42: #{block_stage_2.1} parent=39 // pred_check_branch
          %233 = sbr.rel (%p231) target = $region44
        $region43: #{block_stage_2.1} parent=39 // pred_region
          %s234 = smul.u32 2, %s16
          %p235 = scmp.lt.s32.totalorder %s234, 3
          %s236 = scalar_select %p235, %s234, 3
          %s237 = smul.addr %s236, 8
          %s238 = scalar_lea.vmem %s0, %s237
          %s239 = smul.u32 2, %s16
        $region44: #{block_stage_2.1} parent=39 // pred_fallthru
          _
      $region40: #{block_stage_2.1} parent=5 // pred_fallthru
        _
      %p240 = scmp.le.s32.totalorder 1, %s16
      %p241 = scmp.lt.s32.totalorder %s16, 3
      %p242 = pnand %p240, %p241
      %p243 = pneg %p242
      // Predicated region
      $region45: #{block_stage_2.1} parent=5 // pred_check
        _
      $region46: #{block_stage_2.1} parent=5 // pred_check_branch
        %245 = sbr.rel (%p242) target = $region48
      $region47: #{block_stage_2.1} parent=5 // pred_region
        %s246 = ssub.s32 %s16, 1
        %s247 = smul.u32 2, %s21
        %p248 = scmp.lt.s32.totalorder %s247, 3
        %s249 = scalar_select %p248, %s247, 3
        %s250 = smul.addr %s249, 8
        %s251 = scalar_lea.vmem %s0, %s250
        %p252 = pneg %p42
        %p253 = pneg %p39
        %p254 = pneg %p63
        %p255 = pneg %p60
        %p256 = pneg %p84
        %p257 = pneg %p81
        %p258 = pneg %p105
        %p259 = pneg %p102
        %p260 = pneg %p126
        %p261 = pneg %p123
        %p262 = pneg %p147
        %p263 = pneg %p144
        %p264 = pneg %p168
        %p265 = pneg %p165
        %p266 = pneg %p194
        %p267 = pneg %p191
        %s268 = sand.u32 %s181, 1
        %s269 = scalar_lea.sflag [#allocation3], %s268
        %s270 = sand.u32 %s181, 1
        %s271 = smul.addr %s270, 16
        %s272 = scalar_lea.vmem [#allocation2], %s271
        %s273 = smul.u32 2, %s21
        %p274 = scmp.lt.s32.totalorder %s273, 3
        %s275 = scalar_select %p274, %s273, 3
        %s276 = smul.addr %s275, 8
        %s277 = scalar_lea.vmem %s0, %s276
        %s278 = smul.u32 2, %s21
        %s279 = smul.u32 2, %s21
        %v280 = vlaneseq
        %v281 = vshrl.u32 %v280, 7
        %v282 = vadd.s32 %v281, 8
        %vm283 = vcmp.ne.s32.totalorder %v281, 0
        %vm284 = vcmp.ne.s32.totalorder %v282, 0
        %vm285 = vcmp.ne.s32.totalorder %v281, 15
        %vm286 = vcmp.ne.s32.totalorder %v282, 15
        %v287 = vld [vmem:[%s277] sm:$0xff]
        %v288 = vld [vmem:[%s277 + $0x8] sm:$0xff]
        %v289 = vld [vmem:[%s1] sm:$0xff]
        %v290 = vld [vmem:[%s1 + $0x8] sm:$0xff]
        %v291 = vld [vmem:[%s1 + $0x10] sm:$0xff]
        %v292 = vld [vmem:[%s1 + $0x18] sm:$0xff]
        %v293 = vld [vmem:[%s1 + $0x20] sm:$0xff]
        %v294 = vld [vmem:[%s1 + $0x28] sm:$0xff]
        %v295 = vld [vmem:[%s1 + $0x30] sm:$0xff]
        %v296 = vld [vmem:[%s1 + $0x38] sm:$0xff]
        %v297 = vld [vmem:[%s1 + $0x40] sm:$0xff]
        %v298 = vld [vmem:[%s1 + $0x48] sm:$0xff]
        %v299 = vld [vmem:[%s1 + $0x50] sm:$0xff]
        %v300 = vld [vmem:[%s1 + $0x58] sm:$0xff]
        %v301 = vld [vmem:[%s1 + $0x60] sm:$0xff]
        %v302 = vld [vmem:[%s1 + $0x68] sm:$0xff]
        %v303 = vld [vmem:[%s1 + $0x70] sm:$0xff]
        %v304 = vld [vmem:[%s1 + $0x78] sm:$0xff]
        %305 = vmatprep.subr.mxu0 0.0
        %306 = vmatpush1.msra.mxu0 %v289
        %307 = vmatprep.subr.mxu0 0.0
        %308 = vmatpush1.msra.mxu0 %v290
        %309 = vmatprep.subr.mxu0 0.0
        %310 = vmatpush1.msra.mxu0 %v291
        %311 = vmatprep.subr.mxu0 0.0
        %312 = vmatpush1.msra.mxu0 %v292
        %313 = vmatprep.subr.mxu0 0.0
        %314 = vmatpush1.msra.mxu0 %v293
        %315 = vmatprep.subr.mxu0 0.0
        %316 = vmatpush1.msra.mxu0 %v294
        %317 = vmatprep.subr.mxu0 0.0
        %318 = vmatpush1.msra.mxu0 %v295
        %319 = vmatprep.subr.mxu0 0.0
        %320 = vmatpush1.msra.mxu0 %v296
        %321 = vmatprep.subr.mxu0 0.0
        %322 = vmatpush1.msra.mxu0 %v297
        %323 = vmatprep.subr.mxu0 0.0
        %324 = vmatpush1.msra.mxu0 %v298
        %325 = vmatprep.subr.mxu0 0.0
        %326 = vmatpush1.msra.mxu0 %v299
        %327 = vmatprep.subr.mxu0 0.0
        %328 = vmatpush1.msra.mxu0 %v300
        %329 = vmatprep.subr.mxu0 0.0
        %330 = vmatpush1.msra.mxu0 %v301
        %331 = vmatprep.subr.mxu0 0.0
        %332 = vmatpush1.msra.mxu0 %v302
        %333 = vmatprep.subr.mxu0 0.0
        %334 = vmatpush1.msra.mxu0 %v303
        %335 = vmatprep.subr.mxu0 0.0
        %336 = vmatpush1.msra.mxu0 %v304
        %337 = vmatprep.subr.mxu0 0.0
        %338 = vmatpush1.msra.mxu0 0.0
        %339 = vmatprep.subr.mxu0 0.0
        %340 = vmatpush1.msra.mxu0 0.0
        %341 = vmatprep.subr.mxu0 0.0
        %342 = vmatpush1.msra.mxu0 0.0
        %343 = vmatprep.subr.mxu0 0.0
        %344 = vmatpush1.msra.mxu0 0.0
        %345 = vmatprep.subr.mxu0 0.0
        %346 = vmatpush1.msra.mxu0 0.0
        %347 = vmatprep.subr.mxu0 0.0
        %348 = vmatpush1.msra.mxu0 0.0
        %349 = vmatprep.subr.mxu0 0.0
        %350 = vmatpush1.msra.mxu0 0.0
        %351 = vmatprep.subr.mxu0 0.0
        %352 = vmatpush1.msra.mxu0 0.0
        %353 = vmatprep.subr.mxu0 0.0
        %354 = vmatpush1.msra.mxu0 0.0
        %355 = vmatprep.subr.mxu0 0.0
        %356 = vmatpush1.msra.mxu0 0.0
        %357 = vmatprep.subr.mxu0 0.0
        %358 = vmatpush1.msra.mxu0 0.0
        %359 = vmatprep.subr.mxu0 0.0
        %360 = vmatpush1.msra.mxu0 0.0
        %361 = vmatprep.subr.mxu0 0.0
        %362 = vmatpush1.msra.mxu0 0.0
        %363 = vmatprep.subr.mxu0 0.0
        %364 = vmatpush1.msra.mxu0 0.0
        %365 = vmatprep.subr.mxu0 0.0
        %366 = vmatpush1.msra.mxu0 0.0
        %367 = vmatprep.subr.mxu0 0.0
        %368 = vmatpush1.msra.mxu0 0.0
        %369 = vmatprep.mubr.f32.mxu0 0.0
        %370 = vmatmul.mubr.f32.gmra.mrb[0].mxu0 %v287
        %v371 = vpop.f32.mrb[0].mxu0
        %v372 = vadd.f32 0.0, %v371
        %v373 = vpop.f32.mrb[0].mxu0
        %374 = vmatprep.mubr.f32.mxu0 0.0
        %375 = vmatmul.mubr.f32.gmra.mrb[0].mxu0 %v288
        %v376 = vpop.f32.mrb[0].mxu0
        %v377 = vadd.f32 0.0, %v376
        %v378 = vpop.f32.mrb[0].mxu0
        %379 = vdwg.mxu0
        %s380 = scalar_lea.vmem %s1, 128
        %v381 = vld [vmem:[%s380] sm:$0xff]
        %v382 = vld [vmem:[%s380 + $0x8] sm:$0xff]
        %v383 = vld [vmem:[%s380 + $0x10] sm:$0xff]
        %v384 = vld [vmem:[%s380 + $0x18] sm:$0xff]
        %v385 = vld [vmem:[%s380 + $0x20] sm:$0xff]
        %v386 = vld [vmem:[%s380 + $0x28] sm:$0xff]
        %v387 = vld [vmem:[%s380 + $0x30] sm:$0xff]
        %v388 = vld [vmem:[%s380 + $0x38] sm:$0xff]
        %v389 = vld [vmem:[%s380 + $0x40] sm:$0xff]
        %v390 = vld [vmem:[%s380 + $0x48] sm:$0xff]
        %v391 = vld [vmem:[%s380 + $0x50] sm:$0xff]
        %v392 = vld [vmem:[%s380 + $0x58] sm:$0xff]
        %v393 = vld [vmem:[%s380 + $0x60] sm:$0xff]
        %v394 = vld [vmem:[%s380 + $0x68] sm:$0xff]
        %v395 = vld [vmem:[%s380 + $0x70] sm:$0xff]
        %v396 = vld [vmem:[%s380 + $0x78] sm:$0xff]
        %397 = vmatprep.subr.mxu0 0.0
        %398 = vmatpush1.msra.mxu0 %v381
        %399 = vmatprep.subr.mxu0 0.0
        %400 = vmatpush1.msra.mxu0 %v382
        %401 = vmatprep.subr.mxu0 0.0
        %402 = vmatpush1.msra.mxu0 %v383
        %403 = vmatprep.subr.mxu0 0.0
        %404 = vmatpush1.msra.mxu0 %v384
        %405 = vmatprep.subr.mxu0 0.0
        %406 = vmatpush1.msra.mxu0 %v385
        %407 = vmatprep.subr.mxu0 0.0
        %408 = vmatpush1.msra.mxu0 %v386
        %409 = vmatprep.subr.mxu0 0.0
        %410 = vmatpush1.msra.mxu0 %v387
        %411 = vmatprep.subr.mxu0 0.0
        %412 = vmatpush1.msra.mxu0 %v388
        %413 = vmatprep.subr.mxu0 0.0
        %414 = vmatpush1.msra.mxu0 %v389
        %415 = vmatprep.subr.mxu0 0.0
        %416 = vmatpush1.msra.mxu0 %v390
        %417 = vmatprep.subr.mxu0 0.0
        %418 = vmatpush1.msra.mxu0 %v391
        %419 = vmatprep.subr.mxu0 0.0
        %420 = vmatpush1.msra.mxu0 %v392
        %421 = vmatprep.subr.mxu0 0.0
        %422 = vmatpush1.msra.mxu0 %v393
        %423 = vmatprep.subr.mxu0 0.0
        %424 = vmatpush1.msra.mxu0 %v394
        %425 = vmatprep.subr.mxu0 0.0
        %426 = vmatpush1.msra.mxu0 %v395
        %427 = vmatprep.subr.mxu0 0.0
        %428 = vmatpush1.msra.mxu0 %v396
        %429 = vmatprep.subr.mxu0 0.0
        %430 = vmatpush1.msra.mxu0 0.0
        %431 = vmatprep.subr.mxu0 0.0
        %432 = vmatpush1.msra.mxu0 0.0
        %433 = vmatprep.subr.mxu0 0.0
        %434 = vmatpush1.msra.mxu0 0.0
        %435 = vmatprep.subr.mxu0 0.0
        %436 = vmatpush1.msra.mxu0 0.0
        %437 = vmatprep.subr.mxu0 0.0
        %438 = vmatpush1.msra.mxu0 0.0
        %439 = vmatprep.subr.mxu0 0.0
        %440 = vmatpush1.msra.mxu0 0.0
        %441 = vmatprep.subr.mxu0 0.0
        %442 = vmatpush1.msra.mxu0 0.0
        %443 = vmatprep.subr.mxu0 0.0
        %444 = vmatpush1.msra.mxu0 0.0
        %445 = vmatprep.subr.mxu0 0.0
        %446 = vmatpush1.msra.mxu0 0.0
        %447 = vmatprep.subr.mxu0 0.0
        %448 = vmatpush1.msra.mxu0 0.0
        %449 = vmatprep.subr.mxu0 0.0
        %450 = vmatpush1.msra.mxu0 0.0
        %451 = vmatprep.subr.mxu0 0.0
        %452 = vmatpush1.msra.mxu0 0.0
        %453 = vmatprep.subr.mxu0 0.0
        %454 = vmatpush1.msra.mxu0 0.0
        %455 = vmatprep.subr.mxu0 0.0
        %456 = vmatpush1.msra.mxu0 0.0
        %457 = vmatprep.subr.mxu0 0.0
        %458 = vmatpush1.msra.mxu0 0.0
        %459 = vmatprep.subr.mxu0 0.0
        %460 = vmatpush1.msra.mxu0 0.0
        %461 = vmatprep.mubr.f32.mxu0 0.0
        %462 = vmatmul.mubr.f32.gmra.mrb[0].mxu0 %v287
        %v463 = vpop.f32.mrb[0].mxu0
        %v464 = vadd.f32 0.0, %v463
        %v465 = vpop.f32.mrb[0].mxu0
        %466 = vmatprep.mubr.f32.mxu0 0.0
        %467 = vmatmul.mubr.f32.gmra.mrb[0].mxu0 %v288
        %v468 = vpop.f32.mrb[0].mxu0
        %v469 = vadd.f32 0.0, %v468
        %v470 = vpop.f32.mrb[0].mxu0
        %471 = vdwg.mxu0
        %s472 = scalar_lea.vmem %s1, 256
        %v473 = vld [vmem:[%s472] sm:$0xff]
        %v474 = vld [vmem:[%s472 + $0x8] sm:$0xff]
        %v475 = vld [vmem:[%s472 + $0x10] sm:$0xff]
        %v476 = vld [vmem:[%s472 + $0x18] sm:$0xff]
        %v477 = vld [vmem:[%s472 + $0x20] sm:$0xff]
        %v478 = vld [vmem:[%s472 + $0x28] sm:$0xff]
        %v479 = vld [vmem:[%s472 + $0x30] sm:$0xff]
        %v480 = vld [vmem:[%s472 + $0x38] sm:$0xff]
        %v481 = vld [vmem:[%s472 + $0x40] sm:$0xff]
        %v482 = vld [vmem:[%s472 + $0x48] sm:$0xff]
        %v483 = vld [vmem:[%s472 + $0x50] sm:$0xff]
        %v484 = vld [vmem:[%s472 + $0x58] sm:$0xff]
        %v485 = vld [vmem:[%s472 + $0x60] sm:$0xff]
        %v486 = vld [vmem:[%s472 + $0x68] sm:$0xff]
        %v487 = vld [vmem:[%s472 + $0x70] sm:$0xff]
        %v488 = vld [vmem:[%s472 + $0x78] sm:$0xff]
        %489 = vmatprep.subr.mxu0 0.0
        %490 = vmatpush1.msra.mxu0 %v473
        %491 = vmatprep.subr.mxu0 0.0
        %492 = vmatpush1.msra.mxu0 %v474
        %493 = vmatprep.subr.mxu0 0.0
        %494 = vmatpush1.msra.mxu0 %v475
        %495 = vmatprep.subr.mxu0 0.0
        %496 = vmatpush1.msra.mxu0 %v476
        %497 = vmatprep.subr.mxu0 0.0
        %498 = vmatpush1.msra.mxu0 %v477
        %499 = vmatprep.subr.mxu0 0.0
        %500 = vmatpush1.msra.mxu0 %v478
        %501 = vmatprep.subr.mxu0 0.0
        %502 = vmatpush1.msra.mxu0 %v479
        %503 = vmatprep.subr.mxu0 0.0
        %504 = vmatpush1.msra.mxu0 %v480
        %505 = vmatprep.subr.mxu0 0.0
        %506 = vmatpush1.msra.mxu0 %v481
        %507 = vmatprep.subr.mxu0 0.0
        %508 = vmatpush1.msra.mxu0 %v482
        %509 = vmatprep.subr.mxu0 0.0
        %510 = vmatpush1.msra.mxu0 %v483
        %511 = vmatprep.subr.mxu0 0.0
        %512 = vmatpush1.msra.mxu0 %v484
        %513 = vmatprep.subr.mxu0 0.0
        %514 = vmatpush1.msra.mxu0 %v485
        %515 = vmatprep.subr.mxu0 0.0
        %516 = vmatpush1.msra.mxu0 %v486
        %517 = vmatprep.subr.mxu0 0.0
        %518 = vmatpush1.msra.mxu0 %v487
        %519 = vmatprep.subr.mxu0 0.0
        %520 = vmatpush1.msra.mxu0 %v488
        %521 = vmatprep.subr.mxu0 0.0
        %522 = vmatpush1.msra.mxu0 0.0
        %523 = vmatprep.subr.mxu0 0.0
        %524 = vmatpush1.msra.mxu0 0.0
        %525 = vmatprep.subr.mxu0 0.0
        %526 = vmatpush1.msra.mxu0 0.0
        %527 = vmatprep.subr.mxu0 0.0
        %528 = vmatpush1.msra.mxu0 0.0
        %529 = vmatprep.subr.mxu0 0.0
        %530 = vmatpush1.msra.mxu0 0.0
        %531 = vmatprep.subr.mxu0 0.0
        %532 = vmatpush1.msra.mxu0 0.0
        %533 = vmatprep.subr.mxu0 0.0
        %534 = vmatpush1.msra.mxu0 0.0
        %535 = vmatprep.subr.mxu0 0.0
        %536 = vmatpush1.msra.mxu0 0.0
        %537 = vmatprep.subr.mxu0 0.0
        %538 = vmatpush1.msra.mxu0 0.0
        %539 = vmatprep.subr.mxu0 0.0
        %540 = vmatpush1.msra.mxu0 0.0
        %541 = vmatprep.subr.mxu0 0.0
        %542 = vmatpush1.msra.mxu0 0.0
        %543 = vmatprep.subr.mxu0 0.0
        %544 = vmatpush1.msra.mxu0 0.0
        %545 = vmatprep.subr.mxu0 0.0
        %546 = vmatpush1.msra.mxu0 0.0
        %547 = vmatprep.subr.mxu0 0.0
        %548 = vmatpush1.msra.mxu0 0.0
        %549 = vmatprep.subr.mxu0 0.0
        %550 = vmatpush1.msra.mxu0 0.0
        %551 = vmatprep.subr.mxu0 0.0
        %552 = vmatpush1.msra.mxu0 0.0
        %553 = vmatprep.mubr.f32.mxu0 0.0
        %554 = vmatmul.mubr.f32.gmra.mrb[0].mxu0 %v287
        %v555 = vpop.f32.mrb[0].mxu0
        %v556 = vadd.f32 0.0, %v555
        %v557 = vpop.f32.mrb[0].mxu0
        %558 = vmatprep.mubr.f32.mxu0 0.0
        %559 = vmatmul.mubr.f32.gmra.mrb[0].mxu0 %v288
        %v560 = vpop.f32.mrb[0].mxu0
        %v561 = vadd.f32 0.0, %v560
        %v562 = vpop.f32.mrb[0].mxu0
        %563 = vdwg.mxu0
        %v564 = vrot.slane %v372, 7
        %v565 = vrot.slane %v377, 7
        %vm566 = vcmp.lt.s32.totalorder %v281, 1
        %v567 = vsel %vm566, %v564, %v565
        %v568 = vsel %vm566, %v565, %v564
        %v569 = vsel %vm283, %v568, 0.0
        %v570 = vsel %vm284, %v567, 0.0
        %v571 = vrot.slane %v556, 1
        %v572 = vrot.slane %v561, 1
        %vm573 = vcmp.lt.s32.totalorder %v281, 7
        %v574 = vsel %vm573, %v571, %v572
        %v575 = vsel %vm573, %v572, %v571
        %v576 = vsel %vm285, %v574, 0.0
        %v577 = vsel %vm286, %v575, 0.0
        %v578 = vadd.f32 %v569, %v464
        %v579 = vadd.f32 %v570, %v469
        %v580 = vadd.f32 %v578, %v576
        %v581 = vadd.f32 %v579, %v577
        %v582 = vld [vmem:[%s2] sm:$0x1]
        %v584 = vlaneseq
        %v585 = vshrl.u32 %v584, 7
        %v586 = vsub.s32 0, %v585
        %v587 = vrot.slane %v582, %v586
        %v589 = vadd.f32 %v580, %v587
        %v590 = vadd.f32 %v581, %v587
        %vm591 = vcmp.gt.f32.partialorder %v589, 0.0
        %vm592 = vcmp.gt.f32.partialorder %v590, 0.0
        %v593 = vmul.f32 %v589, 0.05
        %v594 = vmul.f32 %v590, 0.05
        %v595 = vsel %vm591, %v589, %v593
        %v596 = vsel %vm592, %v590, %v594
        %v597 = vld [vmem:[%s3] sm:$0xff]
        %v598 = vld [vmem:[%s3 + $0x8] sm:$0xff]
        %v599 = vld [vmem:[%s3 + $0x10] sm:$0xff]
        %v600 = vld [vmem:[%s3 + $0x18] sm:$0xff]
        %v601 = vld [vmem:[%s3 + $0x20] sm:$0xff]
        %v602 = vld [vmem:[%s3 + $0x28] sm:$0xff]
        %v603 = vld [vmem:[%s3 + $0x30] sm:$0xff]
        %v604 = vld [vmem:[%s3 + $0x38] sm:$0xff]
        %v605 = vld [vmem:[%s3 + $0x40] sm:$0xff]
        %v606 = vld [vmem:[%s3 + $0x48] sm:$0xff]
        %v607 = vld [vmem:[%s3 + $0x50] sm:$0xff]
        %v608 = vld [vmem:[%s3 + $0x58] sm:$0xff]
        %v609 = vld [vmem:[%s3 + $0x60] sm:$0xff]
        %v610 = vld [vmem:[%s3 + $0x68] sm:$0xff]
        %v611 = vld [vmem:[%s3 + $0x70] sm:$0xff]
        %v612 = vld [vmem:[%s3 + $0x78] sm:$0xff]
        %v613 = vld [vmem:[%s4] sm:$0x1]
        %v615 = vlaneseq
        %v616 = vshrl.u32 %v615, 7
        %v617 = vsub.s32 0, %v616
        %v618 = vrot.slane %v613, %v617
        %620 = vmatprep.subr.mxu0 0.0
        %621 = vmatpush1.msra.mxu0 %v597
        %622 = vmatprep.subr.mxu0 0.0
        %623 = vmatpush1.msra.mxu0 %v598
        %624 = vmatprep.subr.mxu0 0.0
        %625 = vmatpush1.msra.mxu0 %v599
        %626 = vmatprep.subr.mxu0 0.0
        %627 = vmatpush1.msra.mxu0 %v600
        %628 = vmatprep.subr.mxu0 0.0
        %629 = vmatpush1.msra.mxu0 %v601
        %630 = vmatprep.subr.mxu0 0.0
        %631 = vmatpush1.msra.mxu0 %v602
        %632 = vmatprep.subr.mxu0 0.0
        %633 = vmatpush1.msra.mxu0 %v603
        %634 = vmatprep.subr.mxu0 0.0
        %635 = vmatpush1.msra.mxu0 %v604
        %636 = vmatprep.subr.mxu0 0.0
        %637 = vmatpush1.msra.mxu0 %v605
        %638 = vmatprep.subr.mxu0 0.0
        %639 = vmatpush1.msra.mxu0 %v606
        %640 = vmatprep.subr.mxu0 0.0
        %641 = vmatpush1.msra.mxu0 %v607
        %642 = vmatprep.subr.mxu0 0.0
        %643 = vmatpush1.msra.mxu0 %v608
        %644 = vmatprep.subr.mxu0 0.0
        %645 = vmatpush1.msra.mxu0 %v609
        %646 = vmatprep.subr.mxu0 0.0
        %647 = vmatpush1.msra.mxu0 %v610
        %648 = vmatprep.subr.mxu0 0.0
        %649 = vmatpush1.msra.mxu0 %v611
        %650 = vmatprep.subr.mxu0 0.0
        %651 = vmatpush1.msra.mxu0 %v612
        %652 = vmatprep.subr.mxu0 0.0
        %653 = vmatpush1.msra.mxu0 0.0
        %654 = vmatprep.subr.mxu0 0.0
        %655 = vmatpush1.msra.mxu0 0.0
        %656 = vmatprep.subr.mxu0 0.0
        %657 = vmatpush1.msra.mxu0 0.0
        %658 = vmatprep.subr.mxu0 0.0
        %659 = vmatpush1.msra.mxu0 0.0
        %660 = vmatprep.subr.mxu0 0.0
        %661 = vmatpush1.msra.mxu0 0.0
        %662 = vmatprep.subr.mxu0 0.0
        %663 = vmatpush1.msra.mxu0 0.0
        %664 = vmatprep.subr.mxu0 0.0
        %665 = vmatpush1.msra.mxu0 0.0
        %666 = vmatprep.subr.mxu0 0.0
        %667 = vmatpush1.msra.mxu0 0.0
        %668 = vmatprep.subr.mxu0 0.0
        %669 = vmatpush1.msra.mxu0 0.0
        %670 = vmatprep.subr.mxu0 0.0
        %671 = vmatpush1.msra.mxu0 0.0
        %672 = vmatprep.subr.mxu0 0.0
        %673 = vmatpush1.msra.mxu0 0.0
        %674 = vmatprep.subr.mxu0 0.0
        %675 = vmatpush1.msra.mxu0 0.0
        %676 = vmatprep.subr.mxu0 0.0
        %677 = vmatpush1.msra.mxu0 0.0
        %678 = vmatprep.subr.mxu0 0.0
        %679 = vmatpush1.msra.mxu0 0.0
        %680 = vmatprep.subr.mxu0 0.0
        %681 = vmatpush1.msra.mxu0 0.0
        %682 = vmatprep.subr.mxu0 0.0
        %683 = vmatpush1.msra.mxu0 0.0
        %684 = vmatprep.mubr.f32.mxu0 0.0
        %685 = vmatmul.mubr.f32.gmra.mrb[0].mxu0 %v595
        %v686 = vpop.f32.mrb[0].mxu0
        %v687 = vadd.f32 %v618, %v686
        %v688 = vpop.f32.mrb[0].mxu0
        %689 = vmatprep.mubr.f32.mxu0 0.0
        %690 = vmatmul.mubr.f32.gmra.mrb[0].mxu0 %v596
        %v691 = vpop.f32.mrb[0].mxu0
        %v692 = vadd.f32 %v618, %v691
        %v693 = vpop.f32.mrb[0].mxu0
        %694 = vdwg.mxu0
        %vm695 = vcmp.gt.f32.partialorder %v687, 0.0
        %vm696 = vcmp.gt.f32.partialorder %v692, 0.0
        %v697 = vmul.f32 %v687, 0.05
        %v698 = vmul.f32 %v692, 0.05
        %v699 = vsel %vm695, %v687, %v697
        %v700 = vsel %vm696, %v692, %v698
        %v701 = vld [vmem:[%s5] sm:$0xff]
        %v702 = vld [vmem:[%s5 + $0x8] sm:$0xff]
        %v703 = vld [vmem:[%s5 + $0x10] sm:$0xff]
        %v704 = vld [vmem:[%s5 + $0x18] sm:$0xff]
        %v705 = vld [vmem:[%s5 + $0x20] sm:$0xff]
        %v706 = vld [vmem:[%s5 + $0x28] sm:$0xff]
        %v707 = vld [vmem:[%s5 + $0x30] sm:$0xff]
        %v708 = vld [vmem:[%s5 + $0x38] sm:$0xff]
        %v709 = vld [vmem:[%s5 + $0x40] sm:$0xff]
        %v710 = vld [vmem:[%s5 + $0x48] sm:$0xff]
        %v711 = vld [vmem:[%s5 + $0x50] sm:$0xff]
        %v712 = vld [vmem:[%s5 + $0x58] sm:$0xff]
        %v713 = vld [vmem:[%s5 + $0x60] sm:$0xff]
        %v714 = vld [vmem:[%s5 + $0x68] sm:$0xff]
        %v715 = vld [vmem:[%s5 + $0x70] sm:$0xff]
        %v716 = vld [vmem:[%s5 + $0x78] sm:$0xff]
        %717 = vmatprep.subr.mxu0 0.0
        %718 = vmatpush1.msra.mxu0 %v701
        %719 = vmatprep.subr.mxu0 0.0
        %720 = vmatpush1.msra.mxu0 %v702
        %721 = vmatprep.subr.mxu0 0.0
        %722 = vmatpush1.msra.mxu0 %v703
        %723 = vmatprep.subr.mxu0 0.0
        %724 = vmatpush1.msra.mxu0 %v704
        %725 = vmatprep.subr.mxu0 0.0
        %726 = vmatpush1.msra.mxu0 %v705
        %727 = vmatprep.subr.mxu0 0.0
        %728 = vmatpush1.msra.mxu0 %v706
        %729 = vmatprep.subr.mxu0 0.0
        %730 = vmatpush1.msra.mxu0 %v707
        %731 = vmatprep.subr.mxu0 0.0
        %732 = vmatpush1.msra.mxu0 %v708
        %733 = vmatprep.subr.mxu0 0.0
        %734 = vmatpush1.msra.mxu0 %v709
        %735 = vmatprep.subr.mxu0 0.0
        %736 = vmatpush1.msra.mxu0 %v710
        %737 = vmatprep.subr.mxu0 0.0
        %738 = vmatpush1.msra.mxu0 %v711
        %739 = vmatprep.subr.mxu0 0.0
        %740 = vmatpush1.msra.mxu0 %v712
        %741 = vmatprep.subr.mxu0 0.0
        %742 = vmatpush1.msra.mxu0 %v713
        %743 = vmatprep.subr.mxu0 0.0
        %744 = vmatpush1.msra.mxu0 %v714
        %745 = vmatprep.subr.mxu0 0.0
        %746 = vmatpush1.msra.mxu0 %v715
        %747 = vmatprep.subr.mxu0 0.0
        %748 = vmatpush1.msra.mxu0 %v716
        %749 = vmatprep.subr.mxu0 0.0
        %750 = vmatpush1.msra.mxu0 0.0
        %751 = vmatprep.subr.mxu0 0.0
        %752 = vmatpush1.msra.mxu0 0.0
        %753 = vmatprep.subr.mxu0 0.0
        %754 = vmatpush1.msra.mxu0 0.0
        %755 = vmatprep.subr.mxu0 0.0
        %756 = vmatpush1.msra.mxu0 0.0
        %757 = vmatprep.subr.mxu0 0.0
        %758 = vmatpush1.msra.mxu0 0.0
        %759 = vmatprep.subr.mxu0 0.0
        %760 = vmatpush1.msra.mxu0 0.0
        %761 = vmatprep.subr.mxu0 0.0
        %762 = vmatpush1.msra.mxu0 0.0
        %763 = vmatprep.subr.mxu0 0.0
        %764 = vmatpush1.msra.mxu0 0.0
        %765 = vmatprep.subr.mxu0 0.0
        %766 = vmatpush1.msra.mxu0 0.0
        %767 = vmatprep.subr.mxu0 0.0
        %768 = vmatpush1.msra.mxu0 0.0
        %769 = vmatprep.subr.mxu0 0.0
        %770 = vmatpush1.msra.mxu0 0.0
        %771 = vmatprep.subr.mxu0 0.0
        %772 = vmatpush1.msra.mxu0 0.0
        %773 = vmatprep.subr.mxu0 0.0
        %774 = vmatpush1.msra.mxu0 0.0
        %775 = vmatprep.subr.mxu0 0.0
        %776 = vmatpush1.msra.mxu0 0.0
        %777 = vmatprep.subr.mxu0 0.0
        %778 = vmatpush1.msra.mxu0 0.0
        %779 = vmatprep.subr.mxu0 0.0
        %780 = vmatpush1.msra.mxu0 0.0
        %781 = vmatprep.mubr.f32.mxu0 0.0
        %782 = vmatmul.mubr.f32.gmra.mrb[0].mxu0 %v699
        %v783 = vpop.f32.mrb[0].mxu0
        %v784 = vadd.f32 0.0, %v783
        %v785 = vpop.f32.mrb[0].mxu0
        %786 = vmatprep.mubr.f32.mxu0 0.0
        %787 = vmatmul.mubr.f32.gmra.mrb[0].mxu0 %v700
        %v788 = vpop.f32.mrb[0].mxu0
        %v789 = vadd.f32 0.0, %v788
        %v790 = vpop.f32.mrb[0].mxu0
        %791 = vdwg.mxu0
        %s792 = scalar_lea.vmem %s5, 128
        %v793 = vld [vmem:[%s792] sm:$0xff]
        %v794 = vld [vmem:[%s792 + $0x8] sm:$0xff]
        %v795 = vld [vmem:[%s792 + $0x10] sm:$0xff]
        %v796 = vld [vmem:[%s792 + $0x18] sm:$0xff]
        %v797 = vld [vmem:[%s792 + $0x20] sm:$0xff]
        %v798 = vld [vmem:[%s792 + $0x28] sm:$0xff]
        %v799 = vld [vmem:[%s792 + $0x30] sm:$0xff]
        %v800 = vld [vmem:[%s792 + $0x38] sm:$0xff]
        %v801 = vld [vmem:[%s792 + $0x40] sm:$0xff]
        %v802 = vld [vmem:[%s792 + $0x48] sm:$0xff]
        %v803 = vld [vmem:[%s792 + $0x50] sm:$0xff]
        %v804 = vld [vmem:[%s792 + $0x58] sm:$0xff]
        %v805 = vld [vmem:[%s792 + $0x60] sm:$0xff]
        %v806 = vld [vmem:[%s792 + $0x68] sm:$0xff]
        %v807 = vld [vmem:[%s792 + $0x70] sm:$0xff]
        %v808 = vld [vmem:[%s792 + $0x78] sm:$0xff]
        %809 = vmatprep.subr.mxu0 0.0
        %810 = vmatpush1.msra.mxu0 %v793
        %811 = vmatprep.subr.mxu0 0.0
        %812 = vmatpush1.msra.mxu0 %v794
        %813 = vmatprep.subr.mxu0 0.0
        %814 = vmatpush1.msra.mxu0 %v795
        %815 = vmatprep.subr.mxu0 0.0
        %816 = vmatpush1.msra.mxu0 %v796
        %817 = vmatprep.subr.mxu0 0.0
        %818 = vmatpush1.msra.mxu0 %v797
        %819 = vmatprep.subr.mxu0 0.0
        %820 = vmatpush1.msra.mxu0 %v798
        %821 = vmatprep.subr.mxu0 0.0
        %822 = vmatpush1.msra.mxu0 %v799
        %823 = vmatprep.subr.mxu0 0.0
        %824 = vmatpush1.msra.mxu0 %v800
        %825 = vmatprep.subr.mxu0 0.0
        %826 = vmatpush1.msra.mxu0 %v801
        %827 = vmatprep.subr.mxu0 0.0
        %828 = vmatpush1.msra.mxu0 %v802
        %829 = vmatprep.subr.mxu0 0.0
        %830 = vmatpush1.msra.mxu0 %v803
        %831 = vmatprep.subr.mxu0 0.0
        %832 = vmatpush1.msra.mxu0 %v804
        %833 = vmatprep.subr.mxu0 0.0
        %834 = vmatpush1.msra.mxu0 %v805
        %835 = vmatprep.subr.mxu0 0.0
        %836 = vmatpush1.msra.mxu0 %v806
        %837 = vmatprep.subr.mxu0 0.0
        %838 = vmatpush1.msra.mxu0 %v807
        %839 = vmatprep.subr.mxu0 0.0
        %840 = vmatpush1.msra.mxu0 %v808
        %841 = vmatprep.subr.mxu0 0.0
        %842 = vmatpush1.msra.mxu0 0.0
        %843 = vmatprep.subr.mxu0 0.0
        %844 = vmatpush1.msra.mxu0 0.0
        %845 = vmatprep.subr.mxu0 0.0
        %846 = vmatpush1.msra.mxu0 0.0
        %847 = vmatprep.subr.mxu0 0.0
        %848 = vmatpush1.msra.mxu0 0.0
        %849 = vmatprep.subr.mxu0 0.0
        %850 = vmatpush1.msra.mxu0 0.0
        %851 = vmatprep.subr.mxu0 0.0
        %852 = vmatpush1.msra.mxu0 0.0
        %853 = vmatprep.subr.mxu0 0.0
        %854 = vmatpush1.msra.mxu0 0.0
        %855 = vmatprep.subr.mxu0 0.0
        %856 = vmatpush1.msra.mxu0 0.0
        %857 = vmatprep.subr.mxu0 0.0
        %858 = vmatpush1.msra.mxu0 0.0
        %859 = vmatprep.subr.mxu0 0.0
        %860 = vmatpush1.msra.mxu0 0.0
        %861 = vmatprep.subr.mxu0 0.0
        %862 = vmatpush1.msra.mxu0 0.0
        %863 = vmatprep.subr.mxu0 0.0
        %864 = vmatpush1.msra.mxu0 0.0
        %865 = vmatprep.subr.mxu0 0.0
        %866 = vmatpush1.msra.mxu0 0.0
        %867 = vmatprep.subr.mxu0 0.0
        %868 = vmatpush1.msra.mxu0 0.0
        %869 = vmatprep.subr.mxu0 0.0
        %870 = vmatpush1.msra.mxu0 0.0
        %871 = vmatprep.subr.mxu0 0.0
        %872 = vmatpush1.msra.mxu0 0.0
        %873 = vmatprep.mubr.f32.mxu0 0.0
        %874 = vmatmul.mubr.f32.gmra.mrb[0].mxu0 %v699
        %v875 = vpop.f32.mrb[0].mxu0
        %v876 = vadd.f32 0.0, %v875
        %v877 = vpop.f32.mrb[0].mxu0
        %878 = vmatprep.mubr.f32.mxu0 0.0
        %879 = vmatmul.mubr.f32.gmra.mrb[0].mxu0 %v700
        %v880 = vpop.f32.mrb[0].mxu0
        %v881 = vadd.f32 0.0, %v880
        %v882 = vpop.f32.mrb[0].mxu0
        %883 = vdwg.mxu0
        %s884 = scalar_lea.vmem %s5, 256
        %v885 = vld [vmem:[%s884] sm:$0xff]
        %v886 = vld [vmem:[%s884 + $0x8] sm:$0xff]
        %v887 = vld [vmem:[%s884 + $0x10] sm:$0xff]
        %v888 = vld [vmem:[%s884 + $0x18] sm:$0xff]
        %v889 = vld [vmem:[%s884 + $0x20] sm:$0xff]
        %v890 = vld [vmem:[%s884 + $0x28] sm:$0xff]
        %v891 = vld [vmem:[%s884 + $0x30] sm:$0xff]
        %v892 = vld [vmem:[%s884 + $0x38] sm:$0xff]
        %v893 = vld [vmem:[%s884 + $0x40] sm:$0xff]
        %v894 = vld [vmem:[%s884 + $0x48] sm:$0xff]
        %v895 = vld [vmem:[%s884 + $0x50] sm:$0xff]
        %v896 = vld [vmem:[%s884 + $0x58] sm:$0xff]
        %v897 = vld [vmem:[%s884 + $0x60] sm:$0xff]
        %v898 = vld [vmem:[%s884 + $0x68] sm:$0xff]
        %v899 = vld [vmem:[%s884 + $0x70] sm:$0xff]
        %v900 = vld [vmem:[%s884 + $0x78] sm:$0xff]
        %901 = vmatprep.subr.mxu0 0.0
        %902 = vmatpush1.msra.mxu0 %v885
        %903 = vmatprep.subr.mxu0 0.0
        %904 = vmatpush1.msra.mxu0 %v886
        %905 = vmatprep.subr.mxu0 0.0
        %906 = vmatpush1.msra.mxu0 %v887
        %907 = vmatprep.subr.mxu0 0.0
        %908 = vmatpush1.msra.mxu0 %v888
        %909 = vmatprep.subr.mxu0 0.0
        %910 = vmatpush1.msra.mxu0 %v889
        %911 = vmatprep.subr.mxu0 0.0
        %912 = vmatpush1.msra.mxu0 %v890
        %913 = vmatprep.subr.mxu0 0.0
        %914 = vmatpush1.msra.mxu0 %v891
        %915 = vmatprep.subr.mxu0 0.0
        %916 = vmatpush1.msra.mxu0 %v892
        %917 = vmatprep.subr.mxu0 0.0
        %918 = vmatpush1.msra.mxu0 %v893
        %919 = vmatprep.subr.mxu0 0.0
        %920 = vmatpush1.msra.mxu0 %v894
        %921 = vmatprep.subr.mxu0 0.0
        %922 = vmatpush1.msra.mxu0 %v895
        %923 = vmatprep.subr.mxu0 0.0
        %924 = vmatpush1.msra.mxu0 %v896
        %925 = vmatprep.subr.mxu0 0.0
        %926 = vmatpush1.msra.mxu0 %v897
        %927 = vmatprep.subr.mxu0 0.0
        %928 = vmatpush1.msra.mxu0 %v898
        %929 = vmatprep.subr.mxu0 0.0
        %930 = vmatpush1.msra.mxu0 %v899
        %931 = vmatprep.subr.mxu0 0.0
        %932 = vmatpush1.msra.mxu0 %v900
        %933 = vmatprep.subr.mxu0 0.0
        %934 = vmatpush1.msra.mxu0 0.0
        %935 = vmatprep.subr.mxu0 0.0
        %936 = vmatpush1.msra.mxu0 0.0
        %937 = vmatprep.subr.mxu0 0.0
        %938 = vmatpush1.msra.mxu0 0.0
        %939 = vmatprep.subr.mxu0 0.0
        %940 = vmatpush1.msra.mxu0 0.0
        %941 = vmatprep.subr.mxu0 0.0
        %942 = vmatpush1.msra.mxu0 0.0
        %943 = vmatprep.subr.mxu0 0.0
        %944 = vmatpush1.msra.mxu0 0.0
        %945 = vmatprep.subr.mxu0 0.0
        %946 = vmatpush1.msra.mxu0 0.0
        %947 = vmatprep.subr.mxu0 0.0
        %948 = vmatpush1.msra.mxu0 0.0
        %949 = vmatprep.subr.mxu0 0.0
        %950 = vmatpush1.msra.mxu0 0.0
        %951 = vmatprep.subr.mxu0 0.0
        %952 = vmatpush1.msra.mxu0 0.0
        %953 = vmatprep.subr.mxu0 0.0
        %954 = vmatpush1.msra.mxu0 0.0
        %955 = vmatprep.subr.mxu0 0.0
        %956 = vmatpush1.msra.mxu0 0.0
        %957 = vmatprep.subr.mxu0 0.0
        %958 = vmatpush1.msra.mxu0 0.0
        %959 = vmatprep.subr.mxu0 0.0
        %960 = vmatpush1.msra.mxu0 0.0
        %961 = vmatprep.subr.mxu0 0.0
        %962 = vmatpush1.msra.mxu0 0.0
        %963 = vmatprep.subr.mxu0 0.0
        %964 = vmatpush1.msra.mxu0 0.0
        %965 = vmatprep.mubr.f32.mxu0 0.0
        %966 = vmatmul.mubr.f32.gmra.mrb[0].mxu0 %v699
        %v967 = vpop.f32.mrb[0].mxu0
        %v968 = vadd.f32 0.0, %v967
        %v969 = vpop.f32.mrb[0].mxu0
        %970 = vmatprep.mubr.f32.mxu0 0.0
        %971 = vmatmul.mubr.f32.gmra.mrb[0].mxu0 %v700
        %v972 = vpop.f32.mrb[0].mxu0
        %v973 = vadd.f32 0.0, %v972
        %v974 = vpop.f32.mrb[0].mxu0
        %975 = vdwg.mxu0
        %v976 = vrot.slane %v784, 7
        %v977 = vrot.slane %v789, 7
        %v978 = vsel %vm566, %v976, %v977
        %v979 = vsel %vm566, %v977, %v976
        %v980 = vsel %vm283, %v979, 0.0
        %v981 = vsel %vm284, %v978, 0.0
        %v982 = vrot.slane %v968, 1
        %v983 = vrot.slane %v973, 1
        %v984 = vsel %vm573, %v982, %v983
        %v985 = vsel %vm573, %v983, %v982
        %v986 = vsel %vm285, %v984, 0.0
        %v987 = vsel %vm286, %v985, 0.0
        %v988 = vadd.f32 %v980, %v876
        %v989 = vadd.f32 %v981, %v881
        %v990 = vadd.f32 %v988, %v986
        %v991 = vadd.f32 %v989, %v987
        %v992 = vld [vmem:[%s6] sm:$0x1]
        %v994 = vlaneseq
        %v995 = vshrl.u32 %v994, 7
        %v996 = vsub.s32 0, %v995
        %v997 = vrot.slane %v992, %v996
        %v999 = vadd.f32 %v990, %v997
        %v1000 = vadd.f32 %v991, %v997
        %vm1001 = vcmp.gt.f32.partialorder %v999, 0.0
        %vm1002 = vcmp.gt.f32.partialorder %v1000, 0.0
        %v1003 = vmul.f32 %v999, 0.05
        %v1004 = vmul.f32 %v1000, 0.05
        %v1005 = vsel %vm1001, %v999, %v1003
        %v1006 = vsel %vm1002, %v1000, %v1004
        %1007 = vst [vmem:[%s272] sm:$0xff] %v1005
        %1008 = vst [vmem:[%s272 + $0x8] sm:$0xff] %v1006
        %s1009 = sand.u32 %s181, 1
        %s1010 = scalar_lea.sflag [#allocation3], %s1009
        %s1011 = sand.u32 %s181, 1
        %s1012 = smul.addr %s1011, 16
        %s1013 = scalar_lea.vmem [#allocation2], %s1012
        // Predicated region
        $region49: #{block_stage_2.1} parent=47 // pred_check
          %p1014 = pneg %p191
        $region50: #{block_stage_2.1} parent=47 // pred_check_branch
          %1016 = sbr.rel (%p1014) target = $region52
        $region51: #{block_stage_2.1} parent=47 // pred_region
          %s1017 = smul.u32 2, %s21
          %s1019 = ssub.s32 256, 256
          %1020 = vsyncadd %s1010, %s1019
          %s1021 = smul.addr %s1017, 128
          %s1022 = scalar_lea.hbm %s7, %s1021
          %s1023 = sshll.u32 %s1013, 4
          %s1024 = int_to_ptr.vmem [resolvable:$true] %s1023
          %1029 = dma.vmem_to_hbm [thread:$0]  %s1024, 256, %s1022, %s1010, 128, 128, 8
        $region52: #{block_stage_2.1} parent=47 // pred_fallthru
          _
      $region48: #{block_stage_2.1} parent=5 // pred_fallthru
        _
      %p1030 = scmp.le.s32.totalorder 2, %s16
      // Predicated region
      $region53: #{block_stage_2.1} parent=5 // pred_check
        %p1031 = pneg %p1030
      $region54: #{block_stage_2.1} parent=5 // pred_check_branch
        %1033 = sbr.rel (%p1031) target = $region56
      $region55: #{block_stage_2.1} parent=5 // pred_region
        %s1034 = ssub.s32 %s16, 2
        // Predicated region
        $region57: #{block_stage_2.1} parent=55 // pred_check
          %p1035 = pneg %p197
        $region58: #{block_stage_2.1} parent=55 // pred_check_branch
          %1037 = sbr.rel (%p1035) target = $region60
        $region59: #{block_stage_2.1} parent=55 // pred_region
          %s1038 = sand.u32 %s182, 1
          %s1039 = scalar_lea.sflag [#allocation3], %s1038
          %s1040 = sand.u32 %s182, 1
          %s1041 = smul.addr %s1040, 16
          %s1042 = scalar_lea.vmem [#allocation2], %s1041
          %1043 = dma.done %s1039, 256
        $region60: #{block_stage_2.1} parent=55 // pred_fallthru
          _
      $region56: #{block_stage_2.1} parent=5 // pred_fallthru
        _
    $region6: #{block_stage_2.1} parent=1 // loop_footer
      %s20 = sadd.s32 1, %s16
    $region7: #{block_stage_2.1} parent=1 // loop_footer_branch
      %15 = sbr.rel target = $region3
    $region8: #{block_stage_2.1} parent=1 // loop_exit
      _
    %1044 = vsyncpa [#allocation3], 1
    %s1045 = scalar_lea.sflag [#allocation3], 1
    %1046 = vsyncpa %s1045, 1

</llo_original>
